<compile_context>
chip_gen: v5e
topology: v5e:2x2
jax: 0.10.0
libtpu: 0.0.40
codegen_flags: <defaults>
</compile_context>

<pallas_src>
import functools

import jax
import jax.numpy as jnp
from jax.experimental import pallas as pl
from jax.experimental.pallas import tpu as pltpu


def _round_up(x, m):
    return (x + m - 1) // m * m


def _ranknet_kernel(num_layer, compute_dtype, x_ref, *refs):
    # refs = [(w_i, b_i) * num_layer, w_last_row, b_last, o_ref]
    o_ref = refs[-1]
    p = refs[:-1]

    # Hidden layers: dropout (identity in eval) -> Linear -> ReLU.
    # x arrives in its stored dtype; the cast to the MXU operand dtype is a
    # free VPU op under this memory-bound roofline, so the wrapper never
    # re-materializes x in HBM.
    h = x_ref[...]
    for i in range(num_layer):
        w = p[2 * i][...]                        # (in_i, out_i), compute_dtype
        b = p[2 * i + 1][...]                    # (1, out_i), f32
        h = jnp.dot(h.astype(compute_dtype), w,
                    preferred_element_type=jnp.float32) + b
        h = jnp.maximum(h, 0.0)                  # ReLU in f32
        # TODO(synk): swap to ELU here if the trial picks 'ELU'.

    # Final Linear(h_last -> 1): a width-1 matmul would waste the MXU output
    # columns, so use a VPU broadcast-multiply + lane reduce instead.  The
    # result is written as a lane-dense (1, tile_m) row.
    w_row = p[2 * num_layer][...]                # (1, h_last), f32
    b_last = p[2 * num_layer + 1][...]           # (1, 1), f32
    scores = jnp.sum(h * w_row, axis=-1) + b_last[0, 0]   # (tile_m,)
    o_ref[...] = scores.reshape(o_ref.shape).astype(o_ref.dtype)


def _pick_tile(n, num_layer, tile_m):
    """Pick the batch tile.

    Big tiles amortize the fixed per-grid-step cost, but:
      * keep >= 2 grid steps for mid/large batches so ("parallel",) actually
        feeds both v7x TensorCores,
      * cap so the lane-padded (tm, 128) f32 intermediates (roughly
        num_layer + 2 live buffers: double-buffered x tile + hidden
        activations) stay under ~24 MiB of scoped VMEM (v5e headroom).
    """
    if n <= 256:
        # Single tiny block; the masked (<128-lane) store is fine at this size.
        return _round_up(max(n, 1), 8)
    per_row_bytes = (num_layer + 2) * 128 * 4
    tm_cap = max(128, (24 * 1024 * 1024 // per_row_bytes) // 128 * 128)
    two_core = _round_up(pl.cdiv(n, 2), 128)     # guarantee grid_m >= 2
    return max(128, min(tile_m, two_core, tm_cap))


def ranknet_forward(x, weights, biases, *, tile_m=8192,
                    compute_dtype=jnp.bfloat16):
    """x: (N, input_dim).  weights[i]: (in_i, out_i), biases[i]: (1, out_i).

    The last (weights, biases) pair is fc_last (out = 1).
    Returns (N, 1) float32 scores.
    """
    n, in_dim = x.shape
    num_layer = len(weights) - 1

    tm = _pick_tile(n, num_layer, tile_m)
    # No jnp.pad: the ragged tail block is read with Pallas boundary padding;
    # the garbage rows are independent and their outputs are sliced off below.
    grid_m = pl.cdiv(n, tm)

    kernel = functools.partial(_ranknet_kernel, num_layer, compute_dtype)

    # x is tiled over the batch (in its stored dtype — no wrapper cast); all
    # parameters are tiny, loaded whole, and stay VMEM-resident (constant
    # block index across the grid).
    in_specs = [pl.BlockSpec((tm, in_dim), lambda i: (i, 0))]
    args = [x]
    for w, b in zip(weights[:-1], biases[:-1]):
        in_specs.append(pl.BlockSpec(w.shape, lambda i: (0, 0)))
        in_specs.append(pl.BlockSpec(b.shape, lambda i: (0, 0)))
        args.append(w.astype(compute_dtype))     # tiny: one-time bf16 cast
        args.append(b.astype(jnp.float32))       # f32 bias add after f32 acc
    # fc_last weight stored as a (1, h_last) row for the VPU reduce.
    w_last_row = weights[-1].reshape(1, -1).astype(jnp.float32)
    b_last = biases[-1].reshape(1, 1).astype(jnp.float32)
    in_specs.append(pl.BlockSpec(w_last_row.shape, lambda i: (0, 0)))
    in_specs.append(pl.BlockSpec(b_last.shape, lambda i: (0, 0)))
    args.append(w_last_row)
    args.append(b_last)

    # Lane-dense output: one (1, tile_m) row per grid step.
    out_spec = pl.BlockSpec((1, tm), lambda i: (i, 0))

    out = pl.pallas_call(
        kernel,
        out_shape=jax.ShapeDtypeStruct((grid_m, tm), jnp.float32),
        grid_spec=pltpu.PrefetchScalarGridSpec(
            num_scalar_prefetch=0,
            grid=(grid_m,),
            in_specs=in_specs,
            out_specs=out_spec,
        ),
        compiler_params=pltpu.CompilerParams(
            dimension_semantics=("parallel",),     # megacore shard on v7x
            vmem_limit_bytes=32 * 1024 * 1024,     # raise v5e's 16 MiB default
        ),
    )(*args)

    scores = out.reshape(-1)
    if scores.shape[0] != n:                       # only ragged tails pay a slice
        scores = scores[:n]
    return scores.reshape(n, 1)


def init_params(key, input_dim, h_dims):
    """Deterministic xavier-normal-ish init for all Linear layers."""
    dims_in = [input_dim] + list(h_dims[:-1])
    dims_out = list(h_dims)
    weights, biases = [], []
    for din, dout in zip(dims_in, dims_out):
        key, wk = jax.random.split(key)
        std = (2.0 / (din + dout)) ** 0.5
        weights.append(jax.random.normal(wk, (din, dout), jnp.float32) * std)
        biases.append(jnp.zeros((1, dout), jnp.float32))
    # fc_last: (h_dims[-1], 1)
    key, wk = jax.random.split(key)
    din, dout = h_dims[-1], 1
    std = (2.0 / (din + dout)) ** 0.5
    weights.append(jax.random.normal(wk, (din, dout), jnp.float32) * std)
    biases.append(jnp.zeros((1, dout), jnp.float32))
    return weights, biases


def reference_forward(x, weights, biases, compute_dtype=jnp.bfloat16):
    """Pure-JAX reference with the same bf16-operand / f32-accumulate numerics."""
    h = x.astype(jnp.float32)
    for w, b in zip(weights[:-1], biases[:-1]):
        h = jnp.dot(h.astype(compute_dtype), w.astype(compute_dtype),
                    preferred_element_type=jnp.float32) + b
        h = jnp.maximum(h, 0.0)
    return h @ weights[-1] + biases[-1]


if __name__ == "__main__":
    key = jax.random.PRNGKey(0)

    # Shapes consistent with the module: num_layer=2, input_dim=32,
    # h_dim=[32, 32].
    input_dim = 32
    h_dims = [32, 32]

    weights, biases = init_params(key, input_dim, h_dims)

    # Small batch (single tiny tile / masked-store path).
    key, xk = jax.random.split(key)
    x_small = jax.random.normal(xk, (8, input_dim), jnp.float32)
    out_small = jax.block_until_ready(ranknet_forward(x_small, weights, biases))
    ref_small = reference_forward(x_small, weights, biases)
    assert out_small.shape == (8, 1)
    assert jnp.allclose(out_small, ref_small, atol=2e-4, rtol=2e-4)

    # Ragged batch with the default tile: two grid steps (two-core split) and
    # an OOB-padded tail block — no wrapper-side jnp.pad / cast / copy of x.
    key, xk = jax.random.split(key)
    x_big = jax.random.normal(xk, (300, input_dim), jnp.float32)
    out_big = jax.block_until_ready(ranknet_forward(x_big, weights, biases))
    ref_big = reference_forward(x_big, weights, biases)
    assert out_big.shape == (300, 1)
    assert jnp.allclose(out_big, ref_big, atol=2e-4, rtol=2e-4)

    # Same batch with an explicit small tile: exercises grid_m=3 multi-tile
    # path with a 128-row lane-dense tile.
    out_t = jax.block_until_ready(
        ranknet_forward(x_big, weights, biases, tile_m=128))
    assert out_t.shape == (300, 1)
    assert jnp.allclose(out_t, ref_big, atol=2e-4, rtol=2e-4)

    print("KERNEL_OK")
</pallas_src>

<mosaic_0001>
module attributes {stable_mosaic.version = 11 : i64} {
  func.func @_ranknet_kernel(%arg0: i32, %arg1: memref<8x32xf32, #tpu.memory_space<vmem>>, %arg2: memref<32x32xbf16, #tpu.memory_space<vmem>>, %arg3: memref<1x32xf32, #tpu.memory_space<vmem>>, %arg4: memref<32x32xbf16, #tpu.memory_space<vmem>>, %arg5: memref<1x32xf32, #tpu.memory_space<vmem>>, %arg6: memref<1x32xf32, #tpu.memory_space<vmem>>, %arg7: memref<1x1xf32, #tpu.memory_space<vmem>>, %arg8: memref<1x8xf32, #tpu.memory_space<vmem>>) attributes {dimension_semantics = [#tpu.dimension_semantics<parallel>], iteration_bounds = array<i64: 1>, scalar_prefetch = 0 : i64, scratch_operands = 0 : i64, tpu.core_type = #tpu.core_type<tc>, window_params = [{transform_indices = @transform_0, window_bounds = array<i64: 8, 32>}, {pipeline_mode = #tpu.pipeline_mode<synchronous>, transform_indices = @transform_1, window_bounds = array<i64: 32, 32>}, {pipeline_mode = #tpu.pipeline_mode<synchronous>, transform_indices = @transform_2, window_bounds = array<i64: 1, 32>}, {pipeline_mode = #tpu.pipeline_mode<synchronous>, transform_indices = @transform_3, window_bounds = array<i64: 32, 32>}, {pipeline_mode = #tpu.pipeline_mode<synchronous>, transform_indices = @transform_4, window_bounds = array<i64: 1, 32>}, {pipeline_mode = #tpu.pipeline_mode<synchronous>, transform_indices = @transform_5, window_bounds = array<i64: 1, 32>}, {pipeline_mode = #tpu.pipeline_mode<synchronous>, transform_indices = @transform_6, window_bounds = array<i64: 1, 1>}, {transform_indices = @transform_7, window_bounds = array<i64: 1, 8>}]} {
    %c0 = arith.constant 0 : index
    %c0_0 = arith.constant 0 : index
    %0 = vector.load %arg1[%c0, %c0_0] : memref<8x32xf32, #tpu.memory_space<vmem>>, vector<8x32xf32>
    %c0_1 = arith.constant 0 : index
    %c0_2 = arith.constant 0 : index
    %1 = vector.load %arg2[%c0_1, %c0_2] : memref<32x32xbf16, #tpu.memory_space<vmem>>, vector<32x32xbf16>
    %c0_3 = arith.constant 0 : index
    %c0_4 = arith.constant 0 : index
    %2 = vector.load %arg3[%c0_3, %c0_4] : memref<1x32xf32, #tpu.memory_space<vmem>>, vector<1x32xf32>
    %3 = arith.truncf %0 : vector<8x32xf32> to vector<8x32xbf16>
    %cst = arith.constant dense<0.000000e+00> : vector<8x32xf32>
    %4 = tpu.matmul %3, %1, %cst {dimension_numbers = #tpu.dot_dimension_numbers<[1], [0], [0], [1], [0, 0, 1, 1], [], []>} : vector<8x32xbf16>, vector<32x32xbf16>, vector<8x32xf32> -> vector<8x32xf32>
    %5 = vector.broadcast %2 : vector<1x32xf32> to vector<8x32xf32>
    %6 = arith.addf %4, %5 : vector<8x32xf32>
    %cst_5 = arith.constant 0.000000e+00 : f32
    %7 = vector.broadcast %cst_5 : f32 to vector<8x32xf32>
    %8 = arith.maximumf %6, %7 : vector<8x32xf32>
    %c0_6 = arith.constant 0 : index
    %c0_7 = arith.constant 0 : index
    %9 = vector.load %arg4[%c0_6, %c0_7] : memref<32x32xbf16, #tpu.memory_space<vmem>>, vector<32x32xbf16>
    %c0_8 = arith.constant 0 : index
    %c0_9 = arith.constant 0 : index
    %10 = vector.load %arg5[%c0_8, %c0_9] : memref<1x32xf32, #tpu.memory_space<vmem>>, vector<1x32xf32>
    %11 = arith.truncf %8 : vector<8x32xf32> to vector<8x32xbf16>
    %cst_10 = arith.constant dense<0.000000e+00> : vector<8x32xf32>
    %12 = tpu.matmul %11, %9, %cst_10 {dimension_numbers = #tpu.dot_dimension_numbers<[1], [0], [0], [1], [0, 0, 1, 1], [], []>} : vector<8x32xbf16>, vector<32x32xbf16>, vector<8x32xf32> -> vector<8x32xf32>
    %13 = vector.broadcast %10 : vector<1x32xf32> to vector<8x32xf32>
    %14 = arith.addf %12, %13 : vector<8x32xf32>
    %cst_11 = arith.constant 0.000000e+00 : f32
    %15 = vector.broadcast %cst_11 : f32 to vector<8x32xf32>
    %16 = arith.maximumf %14, %15 : vector<8x32xf32>
    %c0_12 = arith.constant 0 : index
    %c0_13 = arith.constant 0 : index
    %17 = vector.load %arg6[%c0_12, %c0_13] : memref<1x32xf32, #tpu.memory_space<vmem>>, vector<1x32xf32>
    %c0_14 = arith.constant 0 : index
    %c0_15 = arith.constant 0 : index
    %18 = vector.load %arg7[%c0_14, %c0_15] : memref<1x1xf32, #tpu.memory_space<vmem>>, vector<1x1xf32>
    %19 = vector.broadcast %17 : vector<1x32xf32> to vector<8x32xf32>
    %20 = arith.mulf %16, %19 : vector<8x32xf32>
    %cst_16 = arith.constant dense<0.000000e+00> : vector<8xf32>
    %21 = vector.multi_reduction <add>, %20, %cst_16 [1] : vector<8x32xf32> to vector<8xf32>
    %22 = vector.extract %18[0, 0] : f32 from vector<1x1xf32>
    %23 = vector.broadcast %22 : f32 to vector<8xf32>
    %24 = arith.addf %21, %23 : vector<8xf32>
    %25 = vector.shape_cast %24 : vector<8xf32> to vector<1x8xf32>
    %c0_17 = arith.constant 0 : index
    %c0_18 = arith.constant 0 : index
    %26 = vector.load %arg8[%c0_17, %c0_18] : memref<1x8xf32, #tpu.memory_space<vmem>>, vector<1x8xf32>
    tpu.vector_store %arg8[%c0_17, %c0_18], %25 {strides = array<i32>} : memref<1x8xf32, #tpu.memory_space<vmem>>, vector<1x8xf32>,
    return
  }
  func.func @transform_0(%arg0: i32) -> (i32, i32) {
    %c0_i32 = arith.constant 0 : i32
    %c0_i32_0 = arith.constant 0 : i32
    return %arg0, %c0_i32 : i32, i32
  }
  func.func @transform_1(%arg0: i32) -> (i32, i32) {
    %c0_i32 = arith.constant 0 : i32
    %c0_i32_0 = arith.constant 0 : i32
    %c0_i32_1 = arith.constant 0 : i32
    return %c0_i32, %c0_i32_0 : i32, i32
  }
  func.func @transform_2(%arg0: i32) -> (i32, i32) {
    %c0_i32 = arith.constant 0 : i32
    %c0_i32_0 = arith.constant 0 : i32
    %c0_i32_1 = arith.constant 0 : i32
    return %c0_i32, %c0_i32_0 : i32, i32
  }
  func.func @transform_3(%arg0: i32) -> (i32, i32) {
    %c0_i32 = arith.constant 0 : i32
    %c0_i32_0 = arith.constant 0 : i32
    %c0_i32_1 = arith.constant 0 : i32
    return %c0_i32, %c0_i32_0 : i32, i32
  }
  func.func @transform_4(%arg0: i32) -> (i32, i32) {
    %c0_i32 = arith.constant 0 : i32
    %c0_i32_0 = arith.constant 0 : i32
    %c0_i32_1 = arith.constant 0 : i32
    return %c0_i32, %c0_i32_0 : i32, i32
  }
  func.func @transform_5(%arg0: i32) -> (i32, i32) {
    %c0_i32 = arith.constant 0 : i32
    %c0_i32_0 = arith.constant 0 : i32
    %c0_i32_1 = arith.constant 0 : i32
    return %c0_i32, %c0_i32_0 : i32, i32
  }
  func.func @transform_6(%arg0: i32) -> (i32, i32) {
    %c0_i32 = arith.constant 0 : i32
    %c0_i32_0 = arith.constant 0 : i32
    %c0_i32_1 = arith.constant 0 : i32
    return %c0_i32, %c0_i32_0 : i32, i32
  }
  func.func @transform_7(%arg0: i32) -> (i32, i32) {
    %c0_i32 = arith.constant 0 : i32
    %c0_i32_0 = arith.constant 0 : i32
    return %arg0, %c0_i32 : i32, i32
  }
}

</mosaic_0001>

<llo_original>
// kernel: tpu_custom_call.1
$region0: #{tpu_custom_call.1}
  #allocation0 [shape = 'u32[]', space=smem, size = 0x4, offset = 0x4, fixed_abs, tag = 'smem constant byte address 0x4 - core index']
  #allocation1 [shape = 'u32[72,128]{1,0:T(1,128)}', space=vmem, size = 0x9000, scoped, tag = 'internal scratch']
  #allocation2 [shape = 'f32[1,1]{1,0:T(1,128)S(1)}', space=vmem, size = 0x200, scoped, tag = 'scoped memory for tpu_custom_call.1']
  %s0 = inlined_call_operand.hbm [shape: f32[8,32], index: 0, kind: input, shape index: {}]
  %s1 = inlined_call_operand.hbm [shape: bf16[32,32], index: 1, kind: input, shape index: {}]
  %s2 = inlined_call_operand.vmem [shape: f32[1,32], index: 2, kind: input, shape index: {}]
  %s3 = inlined_call_operand.hbm [shape: bf16[32,32], index: 3, kind: input, shape index: {}]
  %s4 = inlined_call_operand.vmem [shape: f32[1,32], index: 4, kind: input, shape index: {}]
  %s5 = inlined_call_operand.vmem [shape: f32[1,32], index: 5, kind: input, shape index: {}]
  %s6 = inlined_call_operand.<no memory space> [shape: f32[1,1], index: 6, kind: input, shape index: {}]
  %s7 = inlined_call_operand.hbm [shape: f32[1,8], index: 7, kind: output, shape index: {}]
  %s8 = sld [smem:[#allocation0]]
  $region50: #{tpu_custom_call.1} parent=0
    _
  %s10 = ssub.s32 1, %s8
  %s11 = scalar_select 0, %s10, %s8
  %v12 = vstv %s6
  %13 = vst [vmem:[#allocation2] sm:$0x1] %v12
  $region1: #{tpu_custom_call.1} parent=0
    #allocation3 [shape = 'u8[4096]{0}', space=vmem, size = 0x1000, scoped, tag = 'input window, operand 0, single buffered']
    #allocation4 [shape = 's32[1]{0}', space=sflag, size = 0x4, scoped, tag = 'scoped memory for tpu_custom_call.1']
    #allocation5 [shape = 's32[1]{0}', space=sflag, size = 0x4, scoped, tag = 'scoped memory for tpu_custom_call.1']
    #allocation6 [shape = 'u8[8192]{0}', space=vmem, size = 0x2000, scoped, tag = 'input window, operand 1, single buffered']
    #allocation7 [shape = 's32[1]{0}', space=sflag, size = 0x4, scoped, tag = 'scoped memory for tpu_custom_call.1']
    #allocation8 [shape = 'u8[8192]{0}', space=vmem, size = 0x2000, scoped, tag = 'input window, operand 3, single buffered']
    #allocation9 [shape = 'u8[512]{0}', space=vmem, size = 0x400, scoped, tag = 'output window, operand 0, single buffered']
    %14 = vsyncpa [#allocation4], 0
    %15 = vsyncpa [#allocation7], 0
    %16 = vsyncpa [#allocation5], 0
    // Predicated region
    $region2: #{tpu_custom_call.1} parent=1 // pred_check
      _
    $region3: #{tpu_custom_call.1} parent=1 // pred_check_branch
      %18 = sbr.rel (0) target = $region5
    $region4: #{tpu_custom_call.1} parent=1 // pred_region
      %20 = vsyncadd [#allocation4], 0
      %s22 = sshll.u32 %s0, 4
      %s23 = int_to_ptr.hbm [resolvable:$true] %s22
      %s24 = sshll.u32 [#allocation3], 4
      %s25 = int_to_ptr.vmem [resolvable:$true] %s24
      %27 = dma.hbm_to_vmem [thread:$0]  %s23, 128, %s25, [#allocation4]
    $region5: #{tpu_custom_call.1} parent=1 // pred_fallthru
      _
    // Predicated region
    $region6: #{tpu_custom_call.1} parent=1 // pred_check
      _
    $region7: #{tpu_custom_call.1} parent=1 // pred_check_branch
      %29 = sbr.rel (0) target = $region9
    $region8: #{tpu_custom_call.1} parent=1 // pred_region
      %31 = vsyncadd [#allocation7], 0
      %s32 = sshll.u32 %s1, 4
      %s33 = int_to_ptr.hbm [resolvable:$true] %s32
      %s34 = sshll.u32 [#allocation6], 4
      %s35 = int_to_ptr.vmem [resolvable:$true] %s34
      %40 = dma.hbm_to_vmem [thread:$0]  %s33, 256, %s35, [#allocation7], 64, 64, 4
    $region9: #{tpu_custom_call.1} parent=1 // pred_fallthru
      _
    // Predicated region
    $region10: #{tpu_custom_call.1} parent=1 // pred_check
      _
    $region11: #{tpu_custom_call.1} parent=1 // pred_check_branch
      %42 = sbr.rel (0) target = $region13
    $region12: #{tpu_custom_call.1} parent=1 // pred_region
      _
    $region13: #{tpu_custom_call.1} parent=1 // pred_fallthru
      _
    // Predicated region
    $region14: #{tpu_custom_call.1} parent=1 // pred_check
      _
    $region15: #{tpu_custom_call.1} parent=1 // pred_check_branch
      %44 = sbr.rel (0) target = $region17
    $region16: #{tpu_custom_call.1} parent=1 // pred_region
      %46 = vsyncadd [#allocation7], 0
      %s47 = sshll.u32 %s3, 4
      %s48 = int_to_ptr.hbm [resolvable:$true] %s47
      %s49 = sshll.u32 [#allocation8], 4
      %s50 = int_to_ptr.vmem [resolvable:$true] %s49
      %55 = dma.hbm_to_vmem [thread:$0]  %s48, 256, %s50, [#allocation7], 64, 64, 4
    $region17: #{tpu_custom_call.1} parent=1 // pred_fallthru
      _
    // Predicated region
    $region18: #{tpu_custom_call.1} parent=1 // pred_check
      _
    $region19: #{tpu_custom_call.1} parent=1 // pred_check_branch
      %57 = sbr.rel (0) target = $region21
    $region20: #{tpu_custom_call.1} parent=1 // pred_region
      _
    $region21: #{tpu_custom_call.1} parent=1 // pred_fallthru
      _
    // Predicated region
    $region22: #{tpu_custom_call.1} parent=1 // pred_check
      _
    $region23: #{tpu_custom_call.1} parent=1 // pred_check_branch
      %59 = sbr.rel (0) target = $region25
    $region24: #{tpu_custom_call.1} parent=1 // pred_region
      _
    $region25: #{tpu_custom_call.1} parent=1 // pred_fallthru
      _
    // Predicated region
    $region26: #{tpu_custom_call.1} parent=1 // pred_check
      _
    $region27: #{tpu_custom_call.1} parent=1 // pred_check_branch
      %61 = sbr.rel (0) target = $region29
    $region28: #{tpu_custom_call.1} parent=1 // pred_region
      _
    $region29: #{tpu_custom_call.1} parent=1 // pred_fallthru
      _
    // Predicated region
    $region30: #{tpu_custom_call.1} parent=1 // pred_check
      _
    $region31: #{tpu_custom_call.1} parent=1 // pred_check_branch
      %63 = sbr.rel (0) target = $region33
    $region32: #{tpu_custom_call.1} parent=1 // pred_region
      %65 = dma.done [#allocation4], 128
    $region33: #{tpu_custom_call.1} parent=1 // pred_fallthru
      _
    // Predicated region
    $region34: #{tpu_custom_call.1} parent=1 // pred_check
      _
    $region35: #{tpu_custom_call.1} parent=1 // pred_check_branch
      %67 = sbr.rel (0) target = $region37
    $region36: #{tpu_custom_call.1} parent=1 // pred_region
      %69 = dma.done [#allocation7], 256
    $region37: #{tpu_custom_call.1} parent=1 // pred_fallthru
      _
    // Predicated region
    $region38: #{tpu_custom_call.1} parent=1 // pred_check
      _
    $region39: #{tpu_custom_call.1} parent=1 // pred_check_branch
      %71 = sbr.rel (0) target = $region41
    $region40: #{tpu_custom_call.1} parent=1 // pred_region
      %73 = dma.done [#allocation7], 256
    $region41: #{tpu_custom_call.1} parent=1 // pred_fallthru
      _
    %v75 = vld [vmem:[#allocation3] sm:$0xff]
    %v76 = vld [vmem:[#allocation6] sm:$0xf]
    %v77 = vld [vmem:[#allocation6 + $0x4] sm:$0xf]
    %v78 = vld [vmem:[#allocation6 + $0x8] sm:$0xf]
    %v79 = vld [vmem:[#allocation6 + $0xc] sm:$0xf]
    %v80 = vld [vmem:[%s2] sm:$0x1]
    %v81 = vpack.c.bf16 %v75, %v75
    %v83 = vperm.slane %v80, 0
    %v89 = vunpack.c.l.b16 %v76
    %v90 = vunpack.c.l.b16 %v77
    %v91 = vunpack.c.l.b16 %v78
    %v92 = vunpack.c.l.b16 %v79
    %v93 = vpack.c.b16 %v90, %v89
    %v94 = vpack.c.b16 %v92, %v91
    %vm97 = vcmask 261120
    %v99 = vsel %vm97, %v81, 0
    %101 = vmatpush.bf16.msra.mxu0 0
    %102 = vmatpush.bf16.msra.mxu0 0
    %103 = vmatpush.bf16.msra.mxu0 0
    %104 = vmatpush.bf16.msra.mxu0 0
    %105 = vmatpush.bf16.msra.mxu0 0
    %106 = vmatpush.bf16.msra.mxu0 0
    %107 = vmatpush.bf16.msra.mxu0 %v94
    %108 = vmatpush.bf16.msra.mxu0 %v93
    %109 = vmatmul.bf16.gmra.mxu0 %v99
    %v110 = vpop.f32.mrf.mxu0
    %v111 = vadd.f32 %v83, %v110
    %v112 = vpop.f32.mrf.mxu0
    %113 = vdwg.mxu0
    %v114 = vmax.f32 %v111, 0.0
    %v115 = vld [vmem:[#allocation8] sm:$0xf]
    %v116 = vld [vmem:[#allocation8 + $0x4] sm:$0xf]
    %v117 = vld [vmem:[#allocation8 + $0x8] sm:$0xf]
    %v118 = vld [vmem:[#allocation8 + $0xc] sm:$0xf]
    %v119 = vld [vmem:[%s4] sm:$0x1]
    %v120 = vpack.c.bf16 %v114, %v114
    %v122 = vperm.slane %v119, 0
    %v128 = vunpack.c.l.b16 %v115
    %v129 = vunpack.c.l.b16 %v116
    %v130 = vunpack.c.l.b16 %v117
    %v131 = vunpack.c.l.b16 %v118
    %v132 = vpack.c.b16 %v129, %v128
    %v133 = vpack.c.b16 %v131, %v130
    %v137 = vsel %vm97, %v120, 0
    %139 = vmatpush.bf16.msra.mxu0 0
    %140 = vmatpush.bf16.msra.mxu0 0
    %141 = vmatpush.bf16.msra.mxu0 0
    %142 = vmatpush.bf16.msra.mxu0 0
    %143 = vmatpush.bf16.msra.mxu0 0
    %144 = vmatpush.bf16.msra.mxu0 0
    %145 = vmatpush.bf16.msra.mxu0 %v133
    %146 = vmatpush.bf16.msra.mxu0 %v132
    %147 = vmatmul.bf16.gmra.mxu0 %v137
    %v148 = vpop.f32.mrf.mxu0
    %v149 = vadd.f32 %v122, %v148
    %v150 = vpop.f32.mrf.mxu0
    %151 = vdwg.mxu0
    %v152 = vmax.f32 %v149, 0.0
    %v153 = vld [vmem:[%s5] sm:$0x1]
    %v154 = vld [vmem:[#allocation2] sm:$0x1]
    %v156 = vperm.slane %v153, 0
    %v158 = vmul.f32 %v152, %v156
    %v159 = vsel %vm97, %v158, 0.0
    %160 = vadd.xlane.f32.xlu0 %v159
    %v161 = vpop.xlane.xlu0 %160
    %s162 = vtos %v154
    %v163 = vstv %s162
    %v164 = vadd.f32 %v161, %v163
    %v166 = vlaneseq
    %v167 = vand.u32 %v166, 127
    %v168 = vperm.slane %v164, %v167
    %vm170 = vcmask 57344
    %171 = vst.msk [vmem:[#allocation9] sm:$0x1] %vm170, %v168
    // Predicated region
    $region42: #{tpu_custom_call.1} parent=1 // pred_check
      _
    $region43: #{tpu_custom_call.1} parent=1 // pred_check_branch
      %173 = sbr.rel (0) target = $region45
    $region44: #{tpu_custom_call.1} parent=1 // pred_region
      %175 = vsyncadd [#allocation5], 0
      %s177 = sshll.u32 [#allocation9], 4
      %s178 = int_to_ptr.vmem [resolvable:$true] %s177
      %s179 = sshll.u32 %s7, 4
      %s180 = int_to_ptr.hbm [resolvable:$true] %s179
      %182 = dma.vmem_to_hbm [thread:$0]  %s178, 16, %s180, [#allocation5]
    $region45: #{tpu_custom_call.1} parent=1 // pred_fallthru
      _
    // Predicated region
    $region46: #{tpu_custom_call.1} parent=1 // pred_check
      _
    $region47: #{tpu_custom_call.1} parent=1 // pred_check_branch
      %184 = sbr.rel (0) target = $region49
    $region48: #{tpu_custom_call.1} parent=1 // pred_region
      %186 = dma.done [#allocation5], 16
    $region49: #{tpu_custom_call.1} parent=1 // pred_fallthru
      _
    %187 = vsyncpa [#allocation4], 1
    %188 = vsyncpa [#allocation7], 1
    %189 = vsyncpa [#allocation5], 1

</llo_original>
